<compile_context>
chip_gen: v7x
topology: tpu7x:2x2x1
jax: 0.10.0
libtpu: 0.0.40
codegen_flags: <defaults>
</compile_context>

<pallas_src>
import functools

import jax
import jax.numpy as jnp
from jax import lax
from jax.experimental import pallas as pl
from jax.experimental.pallas import tpu as pltpu

_LANES = 128
_NUM_CHUNKS = 2  # leading "parallel" grid axis (2 TCs on v7x; harmless on v5e/v6e)


def _round_up(x, m):
    return ((x + m - 1) // m) * m


def _chunk_sum_kernel(x_ref, out_ref, *, tile_groups, total_groups):
    """Accumulate per-lane/sublane partial sums of one chunk of edge_probs.

    x_ref:   (1, tile_groups, SUB, 128) block of the padded edge-prob tensor.
    out_ref: (1, SUB, 128) f32 partial-sum accumulator for this chunk
             (resident in VMEM across the inner reduction axis).
    """
    i = pl.program_id(1)
    n_last = pl.num_programs(1) - 1

    @pl.when(i == 0)
    def _init():
        out_ref[...] = jnp.zeros_like(out_ref)

    p = x_ref[0].astype(jnp.float32)          # (tile_groups, SUB, 128)

    @pl.when(i != n_last)
    def _body():
        # Interior blocks are fully valid: pure VALU adds, no mask work.
        out_ref[0] += jnp.sum(p, axis=0)

    @pl.when(i == n_last)
    def _tail():
        # Boundary block: groups at/after `total_groups` are undefined
        # (grid over-covers the array) -> select them to 0 before summing.
        g = lax.broadcasted_iota(jnp.int32, p.shape, 0) + i * tile_groups
        pv = jnp.where(g < total_groups, p, 0.0)
        out_ref[0] += jnp.sum(pv, axis=0)


def _edge_prob_sum_pallas(edge_probs, *, tile_groups=512):
    """Sum(edge_probs) via a lane/sublane-dense, double-buffered Pallas reduction."""
    E = edge_probs.shape[0]
    dtype = edge_probs.dtype
    if dtype == jnp.bfloat16 or dtype == jnp.float16:
        sub = 16                      # sub-32-bit dtypes pack 2 rows per sublane
    elif dtype == jnp.float32:
        sub = 8
    else:
        edge_probs = edge_probs.astype(jnp.float32)
        dtype = jnp.dtype(jnp.float32)
        sub = 8

    group_elems = sub * _LANES                       # elements per (SUB,128) tile
    pad_unit = _NUM_CHUNKS * group_elems
    e_pad = _round_up(E, pad_unit)
    if e_pad != E:
        # Small zero pad so the tensor reshapes into whole (SUB,128) tiles.
        # Padded elements contribute exactly 0, so no per-step lane mask needed.
        edge_probs = jnp.pad(edge_probs, (0, e_pad - E))

    groups_per_chunk = e_pad // (_NUM_CHUNKS * group_elems)
    x = edge_probs.reshape(_NUM_CHUNKS, groups_per_chunk, sub, _LANES)

    tg = max(1, min(tile_groups, groups_per_chunk))
    inner_steps = pl.cdiv(groups_per_chunk, tg)

    kernel = functools.partial(_chunk_sum_kernel, tile_groups=tg,
                               total_groups=groups_per_chunk)

    itemsize = jnp.dtype(dtype).itemsize
    partials = pl.pallas_call(
        kernel,
        out_shape=jax.ShapeDtypeStruct((_NUM_CHUNKS, sub, _LANES), jnp.float32),
        grid_spec=pltpu.PrefetchScalarGridSpec(
            num_scalar_prefetch=0,
            grid=(_NUM_CHUNKS, inner_steps),
            in_specs=[pl.BlockSpec((1, tg, sub, _LANES),
                                   lambda c, i: (c, i, 0, 0))],
            out_specs=pl.BlockSpec((1, sub, _LANES),
                                   lambda c, i: (c, 0, 0)),
        ),
        compiler_params=pltpu.CompilerParams(
            dimension_semantics=("parallel", "arbitrary")),
        cost_estimate=pl.CostEstimate(
            flops=e_pad,
            transcendentals=0,
            bytes_accessed=e_pad * itemsize + _NUM_CHUNKS * sub * _LANES * 4),
    )(x)

    # Tiny (2, SUB, 128) cross-lane reduction: once, in XLA, not per grid step.
    return jnp.sum(partials)


def radiality_constraint(edge_probs, num_nodes, lambda_radial=1.0,
                         *, tile_groups=512, min_pallas_edges=65536):
    """Pallas equivalent of RadialityConstraint.forward(edge_probs, num_nodes)."""
    E = edge_probs.shape[0]
    if E == 0:
        # Matches the PyTorch early-return for empty edge sets (static shape).
        return jnp.zeros((), jnp.float32)

    if E < min_pallas_edges:
        # Small-E fast path: XLA's fused reduction is already at roofline; a
        # custom-call boundary would only add launch + pad overhead.
        total = jnp.sum(edge_probs.astype(jnp.float32))
    else:
        total = _edge_prob_sum_pallas(edge_probs, tile_groups=tile_groups)

    # O(1) finalization in the wrapper: keeps num_nodes / lambda_radial
    # traceable (no recompiles) and mean == sum / true E exactly.
    expected = jnp.asarray(num_nodes, jnp.float32) - 1.0
    edge_count_loss = (total - expected) ** 2
    sparsity_loss = total / jnp.float32(E)
    return lambda_radial * edge_count_loss + 0.1 * sparsity_loss


# ---------------------------------------------------------------------------
# Pure-JAX reference (mirrors the PyTorch module)
# ---------------------------------------------------------------------------
def reference_radiality(edge_probs, num_nodes, lambda_radial=1.0):
    if edge_probs.shape[0] == 0:
        return jnp.zeros((), jnp.float32)
    p = edge_probs.astype(jnp.float32)
    actual_edges = p.sum()
    edge_count_loss = (actual_edges - jnp.float32(num_nodes - 1)) ** 2
    sparsity_loss = p.mean()
    return lambda_radial * edge_count_loss + 0.1 * sparsity_loss


if __name__ == "__main__":
    key = jax.random.PRNGKey(0)
    k1, k2, k3 = jax.random.split(key, 3)

    # 1) Small case (8-node graph, 12 candidate edges), Pallas path forced.
    n_small, probs_small = 8, jax.nn.sigmoid(
        jax.random.normal(k1, (12,), dtype=jnp.float32))
    got = jax.block_until_ready(
        radiality_constraint(probs_small, n_small, 1.0, min_pallas_edges=0))
    ref = reference_radiality(probs_small, n_small, 1.0)
    assert jnp.allclose(got, ref, rtol=1e-4, atol=1e-6), (got, ref)

    # 2) Medium case forced through Pallas with a tiny tile to exercise the
    #    multi-step inner grid + boundary-group masking.
    n_med, probs_med = 64, jax.nn.sigmoid(
        jax.random.normal(k2, (5000,), dtype=jnp.float32))
    got = jax.block_until_ready(
        radiality_constraint(probs_med, n_med, 0.5, tile_groups=2,
                             min_pallas_edges=0))
    ref = reference_radiality(probs_med, n_med, 0.5)
    assert jnp.allclose(got, ref, rtol=1e-4, atol=1e-5), (got, ref)

    # 2b) Same medium case through the small-E jnp fast path (default threshold).
    got = jax.block_until_ready(radiality_constraint(probs_med, n_med, 0.5))
    assert jnp.allclose(got, ref, rtol=1e-4, atol=1e-5), (got, ref)

    # 3) Larger case taking the Pallas path naturally (default threshold),
    #    f32 and bf16 inputs, non-multiple-of-tile E (lane pad + mask).
    n_big, probs_big = 512, jax.nn.sigmoid(
        jax.random.normal(k3, (300_000,), dtype=jnp.float32))
    got = jax.block_until_ready(radiality_constraint(probs_big, n_big, 1.0,
                                                     tile_groups=32))
    ref = reference_radiality(probs_big, n_big, 1.0)
    assert jnp.allclose(got, ref, rtol=1e-3, atol=1e-4), (got, ref)

    probs_big_bf16 = probs_big.astype(jnp.bfloat16)
    got = jax.block_until_ready(radiality_constraint(probs_big_bf16, n_big, 1.0))
    ref = reference_radiality(probs_big_bf16.astype(jnp.float32), n_big, 1.0)
    assert jnp.allclose(got, ref, rtol=1e-3, atol=1e-3), (got, ref)

    # 4) Empty-edge case (module returns 0.0).
    got_empty = radiality_constraint(jnp.zeros((0,), jnp.float32), n_small, 1.0)
    assert jnp.allclose(got_empty, 0.0), got_empty

    print("KERNEL_OK")
</pallas_src>

<mosaic_0001>
module attributes {stable_mosaic.version = 11 : i64} {
  func.func @_chunk_sum_kernel(%arg0: i32, %arg1: i32, %arg2: memref<1x1x8x128xf32, #tpu.memory_space<vmem>>, %arg3: memref<1x8x128xf32, #tpu.memory_space<vmem>>) attributes {dimension_semantics = [#tpu.dimension_semantics<parallel>, #tpu.dimension_semantics<arbitrary>], iteration_bounds = array<i64: 2, 1>, scalar_prefetch = 0 : i64, scratch_operands = 0 : i64, tpu.core_type = #tpu.core_type<tc>, window_params = [{transform_indices = @transform_0, window_bounds = array<i64: 1, 1, 8, 128>}, {transform_indices = @transform_1, window_bounds = array<i64: 1, 8, 128>}]} {
    %c0_i32 = arith.constant 0 : i32
    %0 = arith.cmpi eq, %arg1, %c0_i32 : i32
    %1 = arith.extui %0 : i1 to i32
    %c0_i32_0 = arith.constant 0 : i32
    %2 = arith.cmpi ne, %1, %c0_i32_0 : i32
    scf.if %2 {
      %cst = arith.constant 0.000000e+00 : f32
      %11 = vector.broadcast %cst : f32 to vector<1x8x128xf32>
      %c0_8 = arith.constant 0 : index
      %c0_9 = arith.constant 0 : index
      %c0_10 = arith.constant 0 : index
      %12 = vector.load %arg3[%c0_8, %c0_9, %c0_10] : memref<1x8x128xf32, #tpu.memory_space<vmem>>, vector<1x8x128xf32>
      tpu.vector_store %arg3[%c0_8, %c0_9, %c0_10], %11 {strides = array<i32>} : memref<1x8x128xf32, #tpu.memory_space<vmem>>, vector<1x8x128xf32>,
    } else {
    }
    %c0 = arith.constant 0 : index
    %c0_1 = arith.constant 0 : index
    %c0_2 = arith.constant 0 : index
    %c0_3 = arith.constant 0 : index
    %3 = vector.load %arg2[%c0, %c0_1, %c0_2, %c0_3] : memref<1x1x8x128xf32, #tpu.memory_space<vmem>>, vector<1x1x8x128xf32>
    %4 = vector.shape_cast %3 : vector<1x1x8x128xf32> to vector<1x8x128xf32>
    %c0_i32_4 = arith.constant 0 : i32
    %5 = arith.cmpi ne, %arg1, %c0_i32_4 : i32
    %6 = arith.extui %5 : i1 to i32
    %c0_i32_5 = arith.constant 0 : i32
    %7 = arith.cmpi ne, %6, %c0_i32_5 : i32
    scf.if %7 {
      %c0_8 = arith.constant 0 : index
      %c0_9 = arith.constant 0 : index
      %c0_10 = arith.constant 0 : index
      %11 = vector.load %arg3[%c0_8, %c0_9, %c0_10] : memref<1x8x128xf32, #tpu.memory_space<vmem>>, vector<1x8x128xf32>
      %12 = vector.shape_cast %11 : vector<1x8x128xf32> to vector<8x128xf32>
      %cst = arith.constant dense<0.000000e+00> : vector<8x128xf32>
      %13 = vector.multi_reduction <add>, %4, %cst [0] : vector<1x8x128xf32> to vector<8x128xf32>
      %14 = arith.addf %12, %13 : vector<8x128xf32>
      %c0_11 = arith.constant 0 : index
      %c0_12 = arith.constant 0 : index
      %c0_13 = arith.constant 0 : index
      %15 = vector.load %arg3[%c0_11, %c0_12, %c0_13] : memref<1x8x128xf32, #tpu.memory_space<vmem>>, vector<1x8x128xf32>
      %16 = vector.shape_cast %15 : vector<1x8x128xf32> to vector<8x128xf32>
      %17 = vector.shape_cast %14 : vector<8x128xf32> to vector<1x8x128xf32>
      tpu.vector_store %arg3[%c0_11, %c0_12, %c0_13], %17 {strides = array<i32>} : memref<1x8x128xf32, #tpu.memory_space<vmem>>, vector<1x8x128xf32>,
    } else {
    }
    %c0_i32_6 = arith.constant 0 : i32
    %8 = arith.cmpi eq, %arg1, %c0_i32_6 : i32
    %9 = arith.extui %8 : i1 to i32
    %c0_i32_7 = arith.constant 0 : i32
    %10 = arith.cmpi ne, %9, %c0_i32_7 : i32
    scf.if %10 {
      %11 = tpu.iota {dimensions = array<i32: 0>} : vector<1x8x128xi32>
      %c1_i32 = arith.constant 1 : i32
      %12 = arith.muli %arg1, %c1_i32 : i32
      %13 = vector.broadcast %12 : i32 to vector<1x8x128xi32>
      %14 = arith.addi %11, %13 : vector<1x8x128xi32>
      %c1_i32_8 = arith.constant 1 : i32
      %15 = vector.broadcast %c1_i32_8 : i32 to vector<1x8x128xi32>
      %16 = arith.cmpi slt, %14, %15 : vector<1x8x128xi32>
      %cst = arith.constant 0.000000e+00 : f32
      %17 = vector.broadcast %cst : f32 to vector<1x8x128xf32>
      %18 = arith.select %16, %4, %17 : vector<1x8x128xi1>, vector<1x8x128xf32>
      %c0_9 = arith.constant 0 : index
      %c0_10 = arith.constant 0 : index
      %c0_11 = arith.constant 0 : index
      %19 = vector.load %arg3[%c0_9, %c0_10, %c0_11] : memref<1x8x128xf32, #tpu.memory_space<vmem>>, vector<1x8x128xf32>
      %20 = vector.shape_cast %19 : vector<1x8x128xf32> to vector<8x128xf32>
      %cst_12 = arith.constant dense<0.000000e+00> : vector<8x128xf32>
      %21 = vector.multi_reduction <add>, %18, %cst_12 [0] : vector<1x8x128xf32> to vector<8x128xf32>
      %22 = arith.addf %20, %21 : vector<8x128xf32>
      %c0_13 = arith.constant 0 : index
      %c0_14 = arith.constant 0 : index
      %c0_15 = arith.constant 0 : index
      %23 = vector.load %arg3[%c0_13, %c0_14, %c0_15] : memref<1x8x128xf32, #tpu.memory_space<vmem>>, vector<1x8x128xf32>
      %24 = vector.shape_cast %23 : vector<1x8x128xf32> to vector<8x128xf32>
      %25 = vector.shape_cast %22 : vector<8x128xf32> to vector<1x8x128xf32>
      tpu.vector_store %arg3[%c0_13, %c0_14, %c0_15], %25 {strides = array<i32>} : memref<1x8x128xf32, #tpu.memory_space<vmem>>, vector<1x8x128xf32>,
    } else {
    }
    return
  }
  func.func @transform_0(%arg0: i32, %arg1: i32) -> (i32, i32, i32, i32) {
    %c0_i32 = arith.constant 0 : i32
    %c0_i32_0 = arith.constant 0 : i32
    %c0_i32_1 = arith.constant 0 : i32
    return %arg0, %arg1, %c0_i32, %c0_i32_0 : i32, i32, i32, i32
  }
  func.func @transform_1(%arg0: i32, %arg1: i32) -> (i32, i32, i32) {
    %c0_i32 = arith.constant 0 : i32
    %c0_i32_0 = arith.constant 0 : i32
    %c0_i32_1 = arith.constant 0 : i32
    return %arg0, %c0_i32, %c0_i32_0 : i32, i32, i32
  }
}

</mosaic_0001>

<llo_original>
// kernel: tpu_custom_call.1
$region0: #{tpu_custom_call.1}
  #allocation0 [shape = 'u32[]', space=smem, size = 0x4, offset = 0x4, fixed_abs, tag = 'smem constant byte address 0x4 - core index']
  #allocation1 [shape = 'u32[144,128]{1,0:T(1,128)}', space=vmem, size = 0x12000, scoped, tag = 'internal scratch']
  %s0 = inlined_call_operand.hbm [shape: f32[2,1,8,128], index: 0, kind: input, shape index: {}]
  %s1 = inlined_call_operand.hbm [shape: f32[2,8,128], index: 1, kind: output, shape index: {}]
  %s2 = sld [smem:[#allocation0]]
  $region53: #{tpu_custom_call.1} parent=0
    _
  %s4 = ssub.s32 1, %s2
  %s5 = scalar_select 0, %s4, %s2
  $region1: #{tpu_custom_call.1} parent=0
    #allocation2 [shape = 'u8[8192]{0}', space=vmem, size = 0x2000, scoped, tag = 'input window, operand 0']
    #allocation3 [shape = 's32[2]{0}', space=sflag, size = 0x8, scoped, tag = 'scoped memory for tpu_custom_call.1']
    #allocation4 [shape = 's32[2]{0}', space=sflag, size = 0x8, scoped, tag = 'scoped memory for tpu_custom_call.1']
    #allocation5 [shape = 'u8[8192]{0}', space=vmem, size = 0x2000, scoped, tag = 'output window, operand 0']
    %6 = vsyncpa [#allocation3], 0
    %s7 = scalar_lea.sflag [#allocation3], 1
    %8 = vsyncpa %s7, 0
    %9 = vsyncpa [#allocation4], 0
    %s10 = scalar_lea.sflag [#allocation4], 1
    %11 = vsyncpa %s10, 0
    loop: start=0, step=1, limit=4
    $region2: #{tpu_custom_call.1} parent=1 // loop_pre_header
      _
    $region3: #{tpu_custom_call.1} parent=1 // loop_header
      %s13 = sphi 0, %s17
      %p14 = scmp.ge.s32.totalorder %s13, 4
      %s20 = sphi 0, %s32
      %s21 = sphi 0, %s28
      %s22 = sphi 0, %s20
      %s23 = sphi 0, %s21
      %s24 = sphi 0, %s22
      %s25 = sphi 0, %s23
      %s37 = sphi 0, %s39
      %s40 = sphi 0, %s37
      %s41 = sphi 0, %s40
      %s57 = sphi 0, %s41
      %s63 = sphi 0, %s65
      %s66 = sphi 0, %s63
      %s67 = sphi 0, %s66
      %s83 = sphi 0, %s67
    $region4: #{tpu_custom_call.1} parent=1 // loop_header_branch
      %16 = sbr.rel (%p14) target = $region8
    $region5: #{tpu_custom_call.1} parent=1 // loop_body
      %s18 = ssub.s32 %s13, 1
      %s19 = ssub.s32 %s13, 2
      %s26 = sadd.s32 1, %s21
      %p27 = scmp.ge.s32.totalorder %s26, 1
      %s28 = scalar_select %p27, 0, %s26
      %s29 = sadd.s32 1, %s20
      %s30 = scalar_select %p27, %s29, %s20
      %p31 = scmp.ge.s32.totalorder %s30, 2
      %s32 = scalar_select %p31, 0, %s30
      %s33 = ssub.s32 %s20, %s32
      %s34 = ssub.s32 %s21, %s28
      %s35 = sor.u32 %s33, %s34
      %p36 = scmp.eq.s32.totalorder %s35, 0
      %s38 = sadd.s32 %s37, 1
      %s39 = scalar_select %p36, %s37, %s38
      %p42 = pneg %p36
      %p43 = scmp.eq.s32.totalorder %s13, 1
      %p44 = por %p42, %p43
      %p45 = scmp.ne.s32.totalorder %s37, %s40
      %p46 = scmp.eq.s32.totalorder %s13, 0
      %p47 = por %p45, %p46
      %p48 = scmp.ne.s32.totalorder %s37, %s40
      %p49 = scmp.eq.s32.totalorder %s18, 1
      %p50 = por %p48, %p49
      %p51 = scmp.ne.s32.totalorder %s40, %s41
      %p52 = scmp.eq.s32.totalorder %s18, 0
      %p53 = por %p51, %p52
      %p54 = scmp.ne.s32.totalorder %s40, %s41
      %p55 = scmp.eq.s32.totalorder %s19, 1
      %p56 = por %p54, %p55
      %p58 = scmp.ne.s32.totalorder %s41, %s57
      %p59 = scmp.eq.s32.totalorder %s19, 0
      %p60 = por %p58, %p59
      %s61 = ssub.s32 %s20, %s32
      %p62 = scmp.eq.s32.totalorder %s61, 0
      %s64 = sadd.s32 %s63, 1
      %s65 = scalar_select %p62, %s63, %s64
      %p68 = pneg %p62
      %p69 = scmp.eq.s32.totalorder %s13, 1
      %p70 = por %p68, %p69
      %p71 = scmp.ne.s32.totalorder %s63, %s66
      %p72 = scmp.eq.s32.totalorder %s13, 0
      %p73 = por %p71, %p72
      %p74 = scmp.ne.s32.totalorder %s63, %s66
      %p75 = scmp.eq.s32.totalorder %s18, 1
      %p76 = por %p74, %p75
      %p77 = scmp.ne.s32.totalorder %s66, %s67
      %p78 = scmp.eq.s32.totalorder %s18, 0
      %p79 = por %p77, %p78
      %p80 = scmp.ne.s32.totalorder %s66, %s67
      %p81 = scmp.eq.s32.totalorder %s19, 1
      %p82 = por %p80, %p81
      %p84 = scmp.ne.s32.totalorder %s67, %s83
      %p85 = scmp.eq.s32.totalorder %s19, 0
      %p86 = por %p84, %p85
      %p87 = scmp.le.s32.totalorder 1, %s13
      %p88 = scmp.lt.s32.totalorder %s13, 3
      %p89 = pnand %p87, %p88
      %p90 = pneg %p89
      // Predicated region
      $region9: #{tpu_custom_call.1} parent=5 // pred_check
        _
      $region10: #{tpu_custom_call.1} parent=5 // pred_check_branch
        %92 = sbr.rel (%p89) target = $region12
      $region11: #{tpu_custom_call.1} parent=5 // pred_region
        %s93 = ssub.s32 %s13, 1
      $region12: #{tpu_custom_call.1} parent=5 // pred_fallthru
        _
      %p94 = scmp.lt.s32.totalorder %s13, 2
      // Predicated region
      $region13: #{tpu_custom_call.1} parent=5 // pred_check
        %p95 = pneg %p94
      $region14: #{tpu_custom_call.1} parent=5 // pred_check_branch
        %97 = sbr.rel (%p95) target = $region16
      $region15: #{tpu_custom_call.1} parent=5 // pred_region
        // Predicated region
        $region17: #{tpu_custom_call.1} parent=15 // pred_check
          %p98 = pneg %p47
        $region18: #{tpu_custom_call.1} parent=15 // pred_check_branch
          %100 = sbr.rel (%p98) target = $region20
        $region19: #{tpu_custom_call.1} parent=15 // pred_region
          %s101 = sand.u32 %s37, 1
          %s102 = scalar_lea.sflag [#allocation3], %s101
          %s103 = sand.u32 %s37, 1
          %s104 = smul.addr %s103, 8
          %s105 = scalar_lea.vmem [#allocation2], %s104
          %s107 = ssub.s32 128, 128
          %108 = vsyncadd %s102, %s107
          %s109 = sadd.s32 %s21, %s20
          %s110 = smul.addr %s109, 128
          %s111 = scalar_lea.hbm %s0, %s110
          %s113 = sshll.u32 %s105, 4
          %s114 = int_to_ptr.vmem [resolvable:$true] %s113
          %116 = dma.hbm_to_vmem [thread:$0]  %s111, 128, %s114, %s102
        $region20: #{tpu_custom_call.1} parent=15 // pred_fallthru
          _
      $region16: #{tpu_custom_call.1} parent=5 // pred_fallthru
        _
      %p117 = scmp.le.s32.totalorder 1, %s13
      %p118 = scmp.lt.s32.totalorder %s13, 3
      %p119 = pnand %p117, %p118
      %p120 = pneg %p119
      // Predicated region
      $region21: #{tpu_custom_call.1} parent=5 // pred_check
        _
      $region22: #{tpu_custom_call.1} parent=5 // pred_check_branch
        %122 = sbr.rel (%p119) target = $region24
      $region23: #{tpu_custom_call.1} parent=5 // pred_region
        %s123 = ssub.s32 %s13, 1
        %s124 = sand.u32 %s40, 1
        %s125 = scalar_lea.sflag [#allocation3], %s124
        %s126 = sand.u32 %s40, 1
        %s127 = smul.addr %s126, 8
        %s128 = scalar_lea.vmem [#allocation2], %s127
        // Predicated region
        $region25: #{tpu_custom_call.1} parent=23 // pred_check
          %p129 = pneg %p53
        $region26: #{tpu_custom_call.1} parent=23 // pred_check_branch
          %131 = sbr.rel (%p129) target = $region28
        $region27: #{tpu_custom_call.1} parent=23 // pred_region
          %132 = dma.done %s125, 128
        $region28: #{tpu_custom_call.1} parent=23 // pred_fallthru
          _
        %s133 = sand.u32 %s40, 1
        %s134 = scalar_lea.sflag [#allocation3], %s133
        %s135 = sand.u32 %s40, 1
        %s136 = smul.addr %s135, 8
        %s137 = scalar_lea.vmem [#allocation2], %s136
        %p138 = pneg %p53
        %p139 = pneg %p50
        %p140 = pneg %p79
        %p141 = pneg %p76
        %s142 = sand.u32 %s66, 1
        %s143 = scalar_lea.sflag [#allocation4], %s142
        %s144 = sand.u32 %s66, 1
        %s145 = smul.addr %s144, 8
        %s146 = scalar_lea.vmem [#allocation5], %s145
        %p147 = scmp.eq.s32.totalorder %s23, 0
        // Predicated region
        $region29: #{tpu_custom_call.1} parent=23 // pred_check
          %p148 = pneg %p147
        $region30: #{tpu_custom_call.1} parent=23 // pred_check_branch
          %150 = sbr.rel (%p148) target = $region32
        $region31: #{tpu_custom_call.1} parent=23 // pred_region
          %151 = vst [vmem:[%s146] sm:$0xff] 0.0
        $region32: #{tpu_custom_call.1} parent=23 // pred_fallthru
          _
        %v152 = vld [vmem:[%s128] sm:$0xff]
        %p153 = scmp.ne.s32.totalorder %s23, 0
        // Predicated region
        $region33: #{tpu_custom_call.1} parent=23 // pred_check
          %p154 = pneg %p153
        $region34: #{tpu_custom_call.1} parent=23 // pred_check_branch
          %156 = sbr.rel (%p154) target = $region36
        $region35: #{tpu_custom_call.1} parent=23 // pred_region
          %v157 = vld [vmem:[%s146] sm:$0xff]
          %v158 = vadd.f32 %v152, 0.0
          %v159 = vadd.f32 %v157, %v158
          %160 = vst [vmem:[%s146] sm:$0xff] %v159
        $region36: #{tpu_custom_call.1} parent=23 // pred_fallthru
          _
        // Predicated region
        $region37: #{tpu_custom_call.1} parent=23 // pred_check
          %p161 = pneg %p147
        $region38: #{tpu_custom_call.1} parent=23 // pred_check_branch
          %163 = sbr.rel (%p161) target = $region40
        $region39: #{tpu_custom_call.1} parent=23 // pred_region
          %v164 = vstv %s23
          %vm165 = vcmp.lt.s32.totalorder %v164, 1
          %v166 = vsel %vm165, %v152, 0.0
          %v167 = vld [vmem:[%s146] sm:$0xff]
          %v168 = vadd.f32 %v166, 0.0
          %v169 = vadd.f32 %v167, %v168
          %170 = vst [vmem:[%s146] sm:$0xff] %v169
        $region40: #{tpu_custom_call.1} parent=23 // pred_fallthru
          _
        %s171 = sand.u32 %s66, 1
        %s172 = scalar_lea.sflag [#allocation4], %s171
        %s173 = sand.u32 %s66, 1
        %s174 = smul.addr %s173, 8
        %s175 = scalar_lea.vmem [#allocation5], %s174
        // Predicated region
        $region41: #{tpu_custom_call.1} parent=23 // pred_check
          %p176 = pneg %p76
        $region42: #{tpu_custom_call.1} parent=23 // pred_check_branch
          %178 = sbr.rel (%p176) target = $region44
        $region43: #{tpu_custom_call.1} parent=23 // pred_region
          %s180 = ssub.s32 128, 128
          %181 = vsyncadd %s172, %s180
          %s182 = smul.addr %s22, 128
          %s183 = scalar_lea.hbm %s1, %s182
          %s185 = sshll.u32 %s175, 4
          %s186 = int_to_ptr.vmem [resolvable:$true] %s185
          %188 = dma.vmem_to_hbm [thread:$0]  %s186, 128, %s183, %s172
        $region44: #{tpu_custom_call.1} parent=23 // pred_fallthru
          _
      $region24: #{tpu_custom_call.1} parent=5 // pred_fallthru
        _
      %p189 = scmp.le.s32.totalorder 2, %s13
      // Predicated region
      $region45: #{tpu_custom_call.1} parent=5 // pred_check
        %p190 = pneg %p189
      $region46: #{tpu_custom_call.1} parent=5 // pred_check_branch
        %192 = sbr.rel (%p190) target = $region48
      $region47: #{tpu_custom_call.1} parent=5 // pred_region
        %s193 = ssub.s32 %s13, 2
        // Predicated region
        $region49: #{tpu_custom_call.1} parent=47 // pred_check
          %p194 = pneg %p82
        $region50: #{tpu_custom_call.1} parent=47 // pred_check_branch
          %196 = sbr.rel (%p194) target = $region52
        $region51: #{tpu_custom_call.1} parent=47 // pred_region
          %s197 = sand.u32 %s67, 1
          %s198 = scalar_lea.sflag [#allocation4], %s197
          %s199 = sand.u32 %s67, 1
          %s200 = smul.addr %s199, 8
          %s201 = scalar_lea.vmem [#allocation5], %s200
          %202 = dma.done %s198, 128
        $region52: #{tpu_custom_call.1} parent=47 // pred_fallthru
          _
      $region48: #{tpu_custom_call.1} parent=5 // pred_fallthru
        _
    $region6: #{tpu_custom_call.1} parent=1 // loop_footer
      %s17 = sadd.s32 1, %s13
    $region7: #{tpu_custom_call.1} parent=1 // loop_footer_branch
      %12 = sbr.rel target = $region3
    $region8: #{tpu_custom_call.1} parent=1 // loop_exit
      _
    %203 = vsyncpa [#allocation3], 1
    %s204 = scalar_lea.sflag [#allocation3], 1
    %205 = vsyncpa %s204, 1
    %206 = vsyncpa [#allocation4], 1
    %s207 = scalar_lea.sflag [#allocation4], 1
    %208 = vsyncpa %s207, 1

</llo_original>
